<compile_context>
chip_gen: v7x
topology: tpu7x:2x2x1
jax: 0.10.0
libtpu: 0.0.40
codegen_flags: <defaults>
</compile_context>

<pallas_src>
import numpy as np
import jax
import jax.numpy as jnp
from jax.experimental import pallas as pl
from jax.experimental.pallas import tpu as pltpu


# ----------------------------------------------------------------------------
# Kernel
# ----------------------------------------------------------------------------
def _content_fa_kernel(y_ref, a_ref, b_ref, out_ref):
    """y_ref/out_ref: (2P, C, HW_tile); a_ref/b_ref: (2P, C, 1).

    Rows 2p and 2p+1 of the block are an (instance, partner) pair; the partner
    contribution comes from the other row of the same VMEM block, so no second
    HBM read of y is needed.
    """
    n_rows = y_ref.shape[0]              # 2 * pairs_per_step (static)
    for p in range(n_rows // 2):         # small static unroll (<= 8 pairs)
        i0, i1 = 2 * p, 2 * p + 1
        y0 = y_ref[i0]                   # (C, HW_tile)  self
        y1 = y_ref[i1]                   # (C, HW_tile)  partner
        # a = keep*swap (partner weight), b = keep*(1-swap) (self weight)
        out_ref[i0] = a_ref[i0] * y1 + b_ref[i0] * y0
        out_ref[i1] = a_ref[i1] * y0 + b_ref[i1] * y1


# ----------------------------------------------------------------------------
# Wrapper
# ----------------------------------------------------------------------------
def content_fa_pallas(y, swap_mask, keep_mask, *,
                      max_pairs_per_step=8,
                      pair_block_budget_bytes=2 * 1024 * 1024,
                      max_hw_lanes=8192):
    """Apply Content_FA's mix+drop given precomputed channel masks.

    y:         (B, C, H, W) activations (any float dtype; processed natively)
    swap_mask: (B, C) float — 1.0 where channel c of instance b is swapped
               with its adjacent partner (build_fa_masks guarantees the
               partner is i^1, i.e. adjacent pairing, or self with swap==0).
    keep_mask: (B, C) float — 0.0 where channel c of instance b is dropped.
    """
    B, C, H, W = y.shape
    HW = H * W
    dtype = y.dtype
    itemsize = np.dtype(dtype).itemsize

    y3 = y.reshape(B, C, HW)
    swap = jnp.asarray(swap_mask, dtype=dtype).reshape(B, C, 1)
    keep = jnp.asarray(keep_mask, dtype=dtype).reshape(B, C, 1)
    # Fold the two masks: out = a * y_partner + b * y_self
    a = keep * swap
    b = keep * (1.0 - swap)

    # Pad batch to even so every instance has an in-block partner row
    # (padded row has a=0 -> never contributes; it is sliced off afterwards).
    Bp = B + (B % 2)
    if Bp != B:
        y3 = jnp.concatenate([y3, jnp.zeros((1, C, HW), dtype)], axis=0)
        a = jnp.concatenate([a, jnp.zeros((1, C, 1), dtype)], axis=0)
        b = jnp.concatenate([b, jnp.ones((1, C, 1), dtype)], axis=0)
    n_pairs = Bp // 2

    # --- lane (HW) tiling: keep the full HW for modest sizes, otherwise pick
    # a 128-multiple divisor so stores stay lane-dense (no masked vst).
    # TODO(synk): for ragged spatial sizes (e.g. H=W=7 -> HW=49) a lane-dense
    # pad/reshape of HW would avoid masked partial stores; we keep the exact
    # shape here.
    hw_tile = HW
    if HW > max_hw_lanes and HW % 128 == 0:
        t = max_hw_lanes - (max_hw_lanes % 128)
        while t >= 128:
            if HW % t == 0:
                hw_tile = t
                break
            t -= 128

    # --- pairs per grid step: biggest block that fits the VMEM budget
    # (pipeline overhead is ~0.35us/step; tiny per-instance tiles waste it).
    per_pair_bytes = 2 * C * hw_tile * itemsize
    P = max(1, min(max_pairs_per_step,
                   pair_block_budget_bytes // max(per_pair_bytes, 1),
                   n_pairs))
    while n_pairs % P:                    # P must evenly divide the pair count
        P -= 1

    grid = (n_pairs // P, HW // hw_tile)

    cost = pl.CostEstimate(
        flops=3 * B * C * HW,             # 2 mul + 1 add per element
        transcendentals=0,
        bytes_accessed=(2 * B * C * HW + 2 * B * C) * itemsize,
    )

    out = pl.pallas_call(
        _content_fa_kernel,
        out_shape=jax.ShapeDtypeStruct((Bp, C, HW), dtype),
        grid=grid,
        in_specs=[
            # single y input; pair partner lives in the same block
            pl.BlockSpec((2 * P, C, hw_tile), lambda i, j: (i, 0, j)),
            pl.BlockSpec((2 * P, C, 1), lambda i, j: (i, 0, 0)),
            pl.BlockSpec((2 * P, C, 1), lambda i, j: (i, 0, 0)),
        ],
        out_specs=pl.BlockSpec((2 * P, C, hw_tile), lambda i, j: (i, 0, j)),
        compiler_params=pltpu.CompilerParams(
            # every grid step is fully independent -> shard across TCs on v7x
            dimension_semantics=("parallel", "parallel"),
            vmem_limit_bytes=32 * 1024 * 1024,
        ),
        cost_estimate=cost,
    )(y3, a, b)

    return out[:B].reshape(B, C, H, W)


# ----------------------------------------------------------------------------
# Host-side reproduction of Content_FA's random choices (pure numpy glue —
# no device syncs).  Mirrors mix() + drop() of the PyTorch module.
# ----------------------------------------------------------------------------
def build_fa_masks(seed, B, C, *, no_mask=True, prob=1.0,
                   num_mask_channels=None, ranges=(0.1, 0.3)):
    rng = np.random.default_rng(seed)
    scope = B if no_mask else B // num_mask_channels
    partner = np.arange(B, dtype=np.int32)
    swap = np.zeros((B, C), dtype=np.float32)
    keep = np.ones((B, C), dtype=np.float32)

    # ---- mix: swap a random channel subset between adjacent instance pairs
    if rng.random() < prob:
        for i in range(0, scope - 1, 2):
            num_first = int(C * (rng.random() * (ranges[1] - ranges[0])
                                 + ranges[0]))
            perm = rng.permutation(C)
            ch_first = perm[:num_first]
            swap[i, ch_first] = 1.0
            swap[i + 1, ch_first] = 1.0
            partner[i] = i + 1
            partner[i + 1] = i

    # ---- drop: zero a random channel subset across all in-scope instances
    if rng.random() < prob:
        num_first = int(C * (rng.random() * (ranges[1] - ranges[0])
                             + ranges[0]))
        num_second = int(C * (rng.random() * (ranges[1] - ranges[0])
                              + ranges[0]))
        perm = rng.permutation(C)
        ch_second = perm[num_first:num_first + num_second]
        keep[:scope, ch_second] = 0.0

    return partner, swap, keep


def reference_numpy(y, partner, swap, keep):
    y = np.asarray(y)
    out = np.empty_like(y)
    for bi in range(y.shape[0]):
        s = swap[bi][:, None, None]
        k = keep[bi][:, None, None]
        out[bi] = k * (s * y[partner[bi]] + (1.0 - s) * y[bi])
    return out


if __name__ == "__main__":
    # Module config (synthetic): no_mask=True -> whole batch augmented,
    # prob=1.0 -> both mix and drop deterministically exercised.
    B, C, H, W = 4, 16, 16, 16
    key = jax.random.PRNGKey(0)
    y = jax.random.normal(key, (B, C, H, W), dtype=jnp.float32)

    partner, swap, keep = build_fa_masks(0, B, C, no_mask=True, prob=1.0)

    out = content_fa_pallas(y, swap, keep)
    out = jax.block_until_ready(out)

    ref = reference_numpy(y, partner, swap, keep)
    np.testing.assert_allclose(np.asarray(out), ref, rtol=1e-6, atol=1e-6)

    print("KERNEL_OK")
</pallas_src>

<mosaic_0001>
module attributes {stable_mosaic.version = 11 : i64} {
  func.func @_content_fa_kernel(%arg0: i32, %arg1: i32, %arg2: memref<4x16x256xf32, #tpu.memory_space<vmem>>, %arg3: memref<4x16x1xf32, #tpu.memory_space<vmem>>, %arg4: memref<4x16x1xf32, #tpu.memory_space<vmem>>, %arg5: memref<4x16x256xf32, #tpu.memory_space<vmem>>) attributes {dimension_semantics = [#tpu.dimension_semantics<parallel>, #tpu.dimension_semantics<parallel>], iteration_bounds = array<i64: 1, 1>, scalar_prefetch = 0 : i64, scratch_operands = 0 : i64, tpu.core_type = #tpu.core_type<tc>, window_params = [{transform_indices = @transform_0, window_bounds = array<i64: 4, 16, 256>}, {transform_indices = @transform_1, window_bounds = array<i64: 4, 16, 1>}, {transform_indices = @transform_2, window_bounds = array<i64: 4, 16, 1>}, {transform_indices = @transform_3, window_bounds = array<i64: 4, 16, 256>}]} {
    %c0 = arith.constant 0 : index
    %c0_0 = arith.constant 0 : index
    %c0_1 = arith.constant 0 : index
    %0 = vector.load %arg2[%c0, %c0_0, %c0_1] : memref<4x16x256xf32, #tpu.memory_space<vmem>>, vector<1x16x256xf32>
    %1 = vector.shape_cast %0 : vector<1x16x256xf32> to vector<16x256xf32>
    %c1 = arith.constant 1 : index
    %c0_2 = arith.constant 0 : index
    %c0_3 = arith.constant 0 : index
    %2 = vector.load %arg2[%c1, %c0_2, %c0_3] : memref<4x16x256xf32, #tpu.memory_space<vmem>>, vector<1x16x256xf32>
    %3 = vector.shape_cast %2 : vector<1x16x256xf32> to vector<16x256xf32>
    %c0_4 = arith.constant 0 : index
    %c0_5 = arith.constant 0 : index
    %c0_6 = arith.constant 0 : index
    %4 = vector.load %arg3[%c0_4, %c0_5, %c0_6] : memref<4x16x1xf32, #tpu.memory_space<vmem>>, vector<1x16x1xf32>
    %5 = vector.shape_cast %4 : vector<1x16x1xf32> to vector<16x1xf32>
    %6 = vector.broadcast %5 : vector<16x1xf32> to vector<16x256xf32>
    %7 = arith.mulf %6, %3 : vector<16x256xf32>
    %c0_7 = arith.constant 0 : index
    %c0_8 = arith.constant 0 : index
    %c0_9 = arith.constant 0 : index
    %8 = vector.load %arg4[%c0_7, %c0_8, %c0_9] : memref<4x16x1xf32, #tpu.memory_space<vmem>>, vector<1x16x1xf32>
    %9 = vector.shape_cast %8 : vector<1x16x1xf32> to vector<16x1xf32>
    %10 = vector.broadcast %9 : vector<16x1xf32> to vector<16x256xf32>
    %11 = arith.mulf %10, %1 : vector<16x256xf32>
    %12 = arith.addf %7, %11 : vector<16x256xf32>
    %c0_10 = arith.constant 0 : index
    %c0_11 = arith.constant 0 : index
    %c0_12 = arith.constant 0 : index
    %13 = vector.load %arg5[%c0_10, %c0_11, %c0_12] : memref<4x16x256xf32, #tpu.memory_space<vmem>>, vector<1x16x256xf32>
    %14 = vector.shape_cast %13 : vector<1x16x256xf32> to vector<16x256xf32>
    %15 = vector.shape_cast %12 : vector<16x256xf32> to vector<1x16x256xf32>
    tpu.vector_store %arg5[%c0_10, %c0_11, %c0_12], %15 {strides = array<i32>} : memref<4x16x256xf32, #tpu.memory_space<vmem>>, vector<1x16x256xf32>,
    %c1_13 = arith.constant 1 : index
    %c0_14 = arith.constant 0 : index
    %c0_15 = arith.constant 0 : index
    %16 = vector.load %arg3[%c1_13, %c0_14, %c0_15] : memref<4x16x1xf32, #tpu.memory_space<vmem>>, vector<1x16x1xf32>
    %17 = vector.shape_cast %16 : vector<1x16x1xf32> to vector<16x1xf32>
    %18 = vector.broadcast %17 : vector<16x1xf32> to vector<16x256xf32>
    %19 = arith.mulf %18, %1 : vector<16x256xf32>
    %c1_16 = arith.constant 1 : index
    %c0_17 = arith.constant 0 : index
    %c0_18 = arith.constant 0 : index
    %20 = vector.load %arg4[%c1_16, %c0_17, %c0_18] : memref<4x16x1xf32, #tpu.memory_space<vmem>>, vector<1x16x1xf32>
    %21 = vector.shape_cast %20 : vector<1x16x1xf32> to vector<16x1xf32>
    %22 = vector.broadcast %21 : vector<16x1xf32> to vector<16x256xf32>
    %23 = arith.mulf %22, %3 : vector<16x256xf32>
    %24 = arith.addf %19, %23 : vector<16x256xf32>
    %c1_19 = arith.constant 1 : index
    %c0_20 = arith.constant 0 : index
    %c0_21 = arith.constant 0 : index
    %25 = vector.load %arg5[%c1_19, %c0_20, %c0_21] : memref<4x16x256xf32, #tpu.memory_space<vmem>>, vector<1x16x256xf32>
    %26 = vector.shape_cast %25 : vector<1x16x256xf32> to vector<16x256xf32>
    %27 = vector.shape_cast %24 : vector<16x256xf32> to vector<1x16x256xf32>
    tpu.vector_store %arg5[%c1_19, %c0_20, %c0_21], %27 {strides = array<i32>} : memref<4x16x256xf32, #tpu.memory_space<vmem>>, vector<1x16x256xf32>,
    %c2 = arith.constant 2 : index
    %c0_22 = arith.constant 0 : index
    %c0_23 = arith.constant 0 : index
    %28 = vector.load %arg2[%c2, %c0_22, %c0_23] : memref<4x16x256xf32, #tpu.memory_space<vmem>>, vector<1x16x256xf32>
    %29 = vector.shape_cast %28 : vector<1x16x256xf32> to vector<16x256xf32>
    %c3 = arith.constant 3 : index
    %c0_24 = arith.constant 0 : index
    %c0_25 = arith.constant 0 : index
    %30 = vector.load %arg2[%c3, %c0_24, %c0_25] : memref<4x16x256xf32, #tpu.memory_space<vmem>>, vector<1x16x256xf32>
    %31 = vector.shape_cast %30 : vector<1x16x256xf32> to vector<16x256xf32>
    %c2_26 = arith.constant 2 : index
    %c0_27 = arith.constant 0 : index
    %c0_28 = arith.constant 0 : index
    %32 = vector.load %arg3[%c2_26, %c0_27, %c0_28] : memref<4x16x1xf32, #tpu.memory_space<vmem>>, vector<1x16x1xf32>
    %33 = vector.shape_cast %32 : vector<1x16x1xf32> to vector<16x1xf32>
    %34 = vector.broadcast %33 : vector<16x1xf32> to vector<16x256xf32>
    %35 = arith.mulf %34, %31 : vector<16x256xf32>
    %c2_29 = arith.constant 2 : index
    %c0_30 = arith.constant 0 : index
    %c0_31 = arith.constant 0 : index
    %36 = vector.load %arg4[%c2_29, %c0_30, %c0_31] : memref<4x16x1xf32, #tpu.memory_space<vmem>>, vector<1x16x1xf32>
    %37 = vector.shape_cast %36 : vector<1x16x1xf32> to vector<16x1xf32>
    %38 = vector.broadcast %37 : vector<16x1xf32> to vector<16x256xf32>
    %39 = arith.mulf %38, %29 : vector<16x256xf32>
    %40 = arith.addf %35, %39 : vector<16x256xf32>
    %c2_32 = arith.constant 2 : index
    %c0_33 = arith.constant 0 : index
    %c0_34 = arith.constant 0 : index
    %41 = vector.load %arg5[%c2_32, %c0_33, %c0_34] : memref<4x16x256xf32, #tpu.memory_space<vmem>>, vector<1x16x256xf32>
    %42 = vector.shape_cast %41 : vector<1x16x256xf32> to vector<16x256xf32>
    %43 = vector.shape_cast %40 : vector<16x256xf32> to vector<1x16x256xf32>
    tpu.vector_store %arg5[%c2_32, %c0_33, %c0_34], %43 {strides = array<i32>} : memref<4x16x256xf32, #tpu.memory_space<vmem>>, vector<1x16x256xf32>,
    %c3_35 = arith.constant 3 : index
    %c0_36 = arith.constant 0 : index
    %c0_37 = arith.constant 0 : index
    %44 = vector.load %arg3[%c3_35, %c0_36, %c0_37] : memref<4x16x1xf32, #tpu.memory_space<vmem>>, vector<1x16x1xf32>
    %45 = vector.shape_cast %44 : vector<1x16x1xf32> to vector<16x1xf32>
    %46 = vector.broadcast %45 : vector<16x1xf32> to vector<16x256xf32>
    %47 = arith.mulf %46, %29 : vector<16x256xf32>
    %c3_38 = arith.constant 3 : index
    %c0_39 = arith.constant 0 : index
    %c0_40 = arith.constant 0 : index
    %48 = vector.load %arg4[%c3_38, %c0_39, %c0_40] : memref<4x16x1xf32, #tpu.memory_space<vmem>>, vector<1x16x1xf32>
    %49 = vector.shape_cast %48 : vector<1x16x1xf32> to vector<16x1xf32>
    %50 = vector.broadcast %49 : vector<16x1xf32> to vector<16x256xf32>
    %51 = arith.mulf %50, %31 : vector<16x256xf32>
    %52 = arith.addf %47, %51 : vector<16x256xf32>
    %c3_41 = arith.constant 3 : index
    %c0_42 = arith.constant 0 : index
    %c0_43 = arith.constant 0 : index
    %53 = vector.load %arg5[%c3_41, %c0_42, %c0_43] : memref<4x16x256xf32, #tpu.memory_space<vmem>>, vector<1x16x256xf32>
    %54 = vector.shape_cast %53 : vector<1x16x256xf32> to vector<16x256xf32>
    %55 = vector.shape_cast %52 : vector<16x256xf32> to vector<1x16x256xf32>
    tpu.vector_store %arg5[%c3_41, %c0_42, %c0_43], %55 {strides = array<i32>} : memref<4x16x256xf32, #tpu.memory_space<vmem>>, vector<1x16x256xf32>,
    return
  }
  func.func @transform_0(%arg0: i32, %arg1: i32) -> (i32, i32, i32) {
    %c0_i32 = arith.constant 0 : i32
    %c0_i32_0 = arith.constant 0 : i32
    return %arg0, %c0_i32, %arg1 : i32, i32, i32
  }
  func.func @transform_1(%arg0: i32, %arg1: i32) -> (i32, i32, i32) {
    %c0_i32 = arith.constant 0 : i32
    %c0_i32_0 = arith.constant 0 : i32
    %c0_i32_1 = arith.constant 0 : i32
    return %arg0, %c0_i32, %c0_i32_0 : i32, i32, i32
  }
  func.func @transform_2(%arg0: i32, %arg1: i32) -> (i32, i32, i32) {
    %c0_i32 = arith.constant 0 : i32
    %c0_i32_0 = arith.constant 0 : i32
    %c0_i32_1 = arith.constant 0 : i32
    return %arg0, %c0_i32, %c0_i32_0 : i32, i32, i32
  }
  func.func @transform_3(%arg0: i32, %arg1: i32) -> (i32, i32, i32) {
    %c0_i32 = arith.constant 0 : i32
    %c0_i32_0 = arith.constant 0 : i32
    return %arg0, %c0_i32, %arg1 : i32, i32, i32
  }
}

</mosaic_0001>

<llo_original>
// kernel: tpu_custom_call.1
$region0: #{tpu_custom_call.1}
  #allocation0 [shape = 'u32[]', space=smem, size = 0x4, offset = 0x4, fixed_abs, tag = 'smem constant byte address 0x4 - core index']
  #allocation1 [shape = 'u32[144,128]{1,0:T(1,128)}', space=vmem, size = 0x12000, scoped, tag = 'internal scratch']
  %s0 = inlined_call_operand.vmem [shape: f32[4,16,256], index: 0, kind: input, shape index: {}]
  %s1 = inlined_call_operand.vmem [shape: f32[4,16,1], index: 1, kind: input, shape index: {}]
  %s2 = inlined_call_operand.vmem [shape: f32[4,16,1], index: 2, kind: input, shape index: {}]
  %s3 = inlined_call_operand.hbm [shape: f32[4,16,256], index: 3, kind: output, shape index: {}]
  %s4 = sld [smem:[#allocation0]]
  $region22: #{tpu_custom_call.1} parent=0
    _
  %s6 = ssub.s32 1, %s4
  %s7 = scalar_select 0, %s6, %s4
  $region1: #{tpu_custom_call.1} parent=0
    #allocation2 [shape = 'u8[65536]{0}', space=vmem, size = 0x10000, scoped, tag = 'output window, operand 0, single buffered']
    #allocation3 [shape = 's32[1]{0}', space=sflag, size = 0x4, scoped, tag = 'scoped memory for tpu_custom_call.1']
    %8 = vsyncpa [#allocation3], 0
    // Predicated region
    $region2: #{tpu_custom_call.1} parent=1 // pred_check
      _
    $region3: #{tpu_custom_call.1} parent=1 // pred_check_branch
      %10 = sbr.rel (0) target = $region5
    $region4: #{tpu_custom_call.1} parent=1 // pred_region
      _
    $region5: #{tpu_custom_call.1} parent=1 // pred_fallthru
      _
    // Predicated region
    $region6: #{tpu_custom_call.1} parent=1 // pred_check
      _
    $region7: #{tpu_custom_call.1} parent=1 // pred_check_branch
      %12 = sbr.rel (0) target = $region9
    $region8: #{tpu_custom_call.1} parent=1 // pred_region
      _
    $region9: #{tpu_custom_call.1} parent=1 // pred_fallthru
      _
    // Predicated region
    $region10: #{tpu_custom_call.1} parent=1 // pred_check
      _
    $region11: #{tpu_custom_call.1} parent=1 // pred_check_branch
      %14 = sbr.rel (0) target = $region13
    $region12: #{tpu_custom_call.1} parent=1 // pred_region
      _
    $region13: #{tpu_custom_call.1} parent=1 // pred_fallthru
      _
    %v15 = vld [vmem:[%s0] sm:$0xff]
    %v16 = vld [vmem:[%s0 + $0x8] sm:$0xff]
    %v17 = vld [vmem:[%s0 + $0x10] sm:$0xff]
    %v18 = vld [vmem:[%s0 + $0x18] sm:$0xff]
    %s19 = scalar_lea.vmem %s0, 32
    %v20 = vld [vmem:[%s19] sm:$0xff]
    %v21 = vld [vmem:[%s19 + $0x8] sm:$0xff]
    %v22 = vld [vmem:[%s19 + $0x10] sm:$0xff]
    %v23 = vld [vmem:[%s19 + $0x18] sm:$0xff]
    %v24 = vld [vmem:[%s1] sm:$0xff]
    %v25 = vld [vmem:[%s1 + $0x8] sm:$0xff]
    %27 = vset.pattern.permute.xlu0 0
    %28 = vperm.xlu0 %27, %v24
    %v29 = vpop.permute.xlu0 %28
    %32 = vset.pattern.permute.xlu0 0
    %33 = vperm.xlu0 %32, %v25
    %v34 = vpop.permute.xlu0 %33
    %v36 = vmul.f32 %v29, %v20
    %v37 = vmul.f32 %v29, %v21
    %v38 = vmul.f32 %v34, %v22
    %v39 = vmul.f32 %v34, %v23
    %v40 = vld [vmem:[%s2] sm:$0xff]
    %v41 = vld [vmem:[%s2 + $0x8] sm:$0xff]
    %43 = vset.pattern.permute.xlu0 0
    %44 = vperm.xlu0 %43, %v40
    %v45 = vpop.permute.xlu0 %44
    %48 = vset.pattern.permute.xlu0 0
    %49 = vperm.xlu0 %48, %v41
    %v50 = vpop.permute.xlu0 %49
    %v52 = vmul.f32 %v45, %v15
    %v53 = vmul.f32 %v45, %v16
    %v54 = vmul.f32 %v50, %v17
    %v55 = vmul.f32 %v50, %v18
    %v56 = vadd.f32 %v36, %v52
    %v57 = vadd.f32 %v37, %v53
    %v58 = vadd.f32 %v38, %v54
    %v59 = vadd.f32 %v39, %v55
    %60 = vst [vmem:[#allocation2] sm:$0xff] %v56
    %61 = vst [vmem:[#allocation2 + $0x8] sm:$0xff] %v57
    %62 = vst [vmem:[#allocation2 + $0x10] sm:$0xff] %v58
    %63 = vst [vmem:[#allocation2 + $0x18] sm:$0xff] %v59
    %s64 = scalar_lea.vmem %s1, 16
    %v65 = vld [vmem:[%s64] sm:$0xff]
    %v66 = vld [vmem:[%s64 + $0x8] sm:$0xff]
    %68 = vset.pattern.permute.xlu0 0
    %69 = vperm.xlu0 %68, %v65
    %v70 = vpop.permute.xlu0 %69
    %73 = vset.pattern.permute.xlu0 0
    %74 = vperm.xlu0 %73, %v66
    %v75 = vpop.permute.xlu0 %74
    %v77 = vmul.f32 %v70, %v15
    %v78 = vmul.f32 %v70, %v16
    %v79 = vmul.f32 %v75, %v17
    %v80 = vmul.f32 %v75, %v18
    %s81 = scalar_lea.vmem %s2, 16
    %v82 = vld [vmem:[%s81] sm:$0xff]
    %v83 = vld [vmem:[%s81 + $0x8] sm:$0xff]
    %85 = vset.pattern.permute.xlu0 0
    %86 = vperm.xlu0 %85, %v82
    %v87 = vpop.permute.xlu0 %86
    %90 = vset.pattern.permute.xlu0 0
    %91 = vperm.xlu0 %90, %v83
    %v92 = vpop.permute.xlu0 %91
    %v94 = vmul.f32 %v87, %v20
    %v95 = vmul.f32 %v87, %v21
    %v96 = vmul.f32 %v92, %v22
    %v97 = vmul.f32 %v92, %v23
    %v98 = vadd.f32 %v77, %v94
    %v99 = vadd.f32 %v78, %v95
    %v100 = vadd.f32 %v79, %v96
    %v101 = vadd.f32 %v80, %v97
    %s102 = scalar_lea.vmem [#allocation2], 32
    %103 = vst [vmem:[%s102] sm:$0xff] %v98
    %104 = vst [vmem:[%s102 + $0x8] sm:$0xff] %v99
    %105 = vst [vmem:[%s102 + $0x10] sm:$0xff] %v100
    %106 = vst [vmem:[%s102 + $0x18] sm:$0xff] %v101
    %s107 = scalar_lea.vmem %s0, 64
    %v108 = vld [vmem:[%s107] sm:$0xff]
    %v109 = vld [vmem:[%s107 + $0x8] sm:$0xff]
    %v110 = vld [vmem:[%s107 + $0x10] sm:$0xff]
    %v111 = vld [vmem:[%s107 + $0x18] sm:$0xff]
    %s112 = scalar_lea.vmem %s0, 96
    %v113 = vld [vmem:[%s112] sm:$0xff]
    %v114 = vld [vmem:[%s112 + $0x8] sm:$0xff]
    %v115 = vld [vmem:[%s112 + $0x10] sm:$0xff]
    %v116 = vld [vmem:[%s112 + $0x18] sm:$0xff]
    %s117 = scalar_lea.vmem %s1, 32
    %v118 = vld [vmem:[%s117] sm:$0xff]
    %v119 = vld [vmem:[%s117 + $0x8] sm:$0xff]
    %121 = vset.pattern.permute.xlu0 0
    %122 = vperm.xlu0 %121, %v118
    %v123 = vpop.permute.xlu0 %122
    %126 = vset.pattern.permute.xlu0 0
    %127 = vperm.xlu0 %126, %v119
    %v128 = vpop.permute.xlu0 %127
    %v130 = vmul.f32 %v123, %v113
    %v131 = vmul.f32 %v123, %v114
    %v132 = vmul.f32 %v128, %v115
    %v133 = vmul.f32 %v128, %v116
    %s134 = scalar_lea.vmem %s2, 32
    %v135 = vld [vmem:[%s134] sm:$0xff]
    %v136 = vld [vmem:[%s134 + $0x8] sm:$0xff]
    %138 = vset.pattern.permute.xlu0 0
    %139 = vperm.xlu0 %138, %v135
    %v140 = vpop.permute.xlu0 %139
    %143 = vset.pattern.permute.xlu0 0
    %144 = vperm.xlu0 %143, %v136
    %v145 = vpop.permute.xlu0 %144
    %v147 = vmul.f32 %v140, %v108
    %v148 = vmul.f32 %v140, %v109
    %v149 = vmul.f32 %v145, %v110
    %v150 = vmul.f32 %v145, %v111
    %v151 = vadd.f32 %v130, %v147
    %v152 = vadd.f32 %v131, %v148
    %v153 = vadd.f32 %v132, %v149
    %v154 = vadd.f32 %v133, %v150
    %s155 = scalar_lea.vmem [#allocation2], 64
    %156 = vst [vmem:[%s155] sm:$0xff] %v151
    %157 = vst [vmem:[%s155 + $0x8] sm:$0xff] %v152
    %158 = vst [vmem:[%s155 + $0x10] sm:$0xff] %v153
    %159 = vst [vmem:[%s155 + $0x18] sm:$0xff] %v154
    %s160 = scalar_lea.vmem %s1, 48
    %v161 = vld [vmem:[%s160] sm:$0xff]
    %v162 = vld [vmem:[%s160 + $0x8] sm:$0xff]
    %164 = vset.pattern.permute.xlu0 0
    %165 = vperm.xlu0 %164, %v161
    %v166 = vpop.permute.xlu0 %165
    %169 = vset.pattern.permute.xlu0 0
    %170 = vperm.xlu0 %169, %v162
    %v171 = vpop.permute.xlu0 %170
    %v173 = vmul.f32 %v166, %v108
    %v174 = vmul.f32 %v166, %v109
    %v175 = vmul.f32 %v171, %v110
    %v176 = vmul.f32 %v171, %v111
    %s177 = scalar_lea.vmem %s2, 48
    %v178 = vld [vmem:[%s177] sm:$0xff]
    %v179 = vld [vmem:[%s177 + $0x8] sm:$0xff]
    %181 = vset.pattern.permute.xlu0 0
    %182 = vperm.xlu0 %181, %v178
    %v183 = vpop.permute.xlu0 %182
    %186 = vset.pattern.permute.xlu0 0
    %187 = vperm.xlu0 %186, %v179
    %v188 = vpop.permute.xlu0 %187
    %v190 = vmul.f32 %v183, %v113
    %v191 = vmul.f32 %v183, %v114
    %v192 = vmul.f32 %v188, %v115
    %v193 = vmul.f32 %v188, %v116
    %v194 = vadd.f32 %v173, %v190
    %v195 = vadd.f32 %v174, %v191
    %v196 = vadd.f32 %v175, %v192
    %v197 = vadd.f32 %v176, %v193
    %s198 = scalar_lea.vmem [#allocation2], 96
    %199 = vst [vmem:[%s198] sm:$0xff] %v194
    %200 = vst [vmem:[%s198 + $0x8] sm:$0xff] %v195
    %201 = vst [vmem:[%s198 + $0x10] sm:$0xff] %v196
    %202 = vst [vmem:[%s198 + $0x18] sm:$0xff] %v197
    // Predicated region
    $region14: #{tpu_custom_call.1} parent=1 // pred_check
      _
    $region15: #{tpu_custom_call.1} parent=1 // pred_check_branch
      %204 = sbr.rel (0) target = $region17
    $region16: #{tpu_custom_call.1} parent=1 // pred_region
      %s206 = ssub.s32 2048, 2048
      %207 = vsyncadd [#allocation3], %s206
      %s208 = sshll.u32 [#allocation2], 4
      %s209 = int_to_ptr.vmem [resolvable:$true] %s208
      %214 = dma.vmem_to_hbm [thread:$0]  %s209, 2048, %s3, [#allocation3], 256, 256, 16
    $region17: #{tpu_custom_call.1} parent=1 // pred_fallthru
      _
    // Predicated region
    $region18: #{tpu_custom_call.1} parent=1 // pred_check
      _
    $region19: #{tpu_custom_call.1} parent=1 // pred_check_branch
      %216 = sbr.rel (0) target = $region21
    $region20: #{tpu_custom_call.1} parent=1 // pred_region
      %217 = dma.done [#allocation3], 2048
    $region21: #{tpu_custom_call.1} parent=1 // pred_fallthru
      _
    %218 = vsyncpa [#allocation3], 1

</llo_original>
